<compile_context>
chip_gen: v6e
topology: v6e:2x2x1
jax: 0.10.0
libtpu: 0.0.40
codegen_flags: <defaults>
</compile_context>

<pallas_src>
import jax
import jax.numpy as jnp
from jax.experimental import pallas as pl
from jax.experimental.pallas import tpu as pltpu

LANE = 128
_MIB = 1024 * 1024


def _round_up(x, m):
    return ((x + m - 1) // m) * m


def _cdiv(a, b):
    return (a + b - 1) // b


def _vmem_capacity_bytes():
    try:
        return int(pltpu.get_tpu_info().vmem_capacity_bytes)
    except Exception:
        return 64 * _MIB  # conservative fallback (v7x per-TC VMEM)


# --------------------------------------------------------------------------
# Kernel
# --------------------------------------------------------------------------
def autoencoder_kernel(x_ref, w1_ref, b1_ref, w2_ref, b2_ref,
                       w3_ref, b3_ref, w4_ref, b4_ref, o_ref):
    # x / weights are bf16 (MXU-native); accumulation + bias/ReLU in f32.
    x = x_ref[...]

    # encoder.layer_1 + relu
    h1 = jnp.dot(x, w1_ref[...], preferred_element_type=jnp.float32) + b1_ref[...]
    h1 = jnp.maximum(h1, 0.0).astype(w2_ref.dtype)

    # encoder.layer_out (no activation)
    z = jnp.dot(h1, w2_ref[...], preferred_element_type=jnp.float32) + b2_ref[...]
    z = z.astype(w3_ref.dtype)

    # decoder.layer_1 + relu
    h2 = jnp.dot(z, w3_ref[...], preferred_element_type=jnp.float32) + b3_ref[...]
    h2 = jnp.maximum(h2, 0.0).astype(w4_ref.dtype)

    # decoder.layer_out
    y = jnp.dot(h2, w4_ref[...], preferred_element_type=jnp.float32) + b4_ref[...]
    o_ref[...] = y.astype(o_ref.dtype)


# --------------------------------------------------------------------------
# Parameter preparation (do ONCE, cache the result)
# --------------------------------------------------------------------------
def prepare_params(params, compute_dtype=jnp.bfloat16):
    """Pad feature dims to 128 and cast weights to the MXU dtype, once."""
    input_size, hidden_size = params["w1"].shape
    output_size = params["w2"].shape[1]
    assert params["w4"].shape == (hidden_size, input_size)

    p_in = _round_up(input_size, LANE)
    p_hid = _round_up(hidden_size, LANE)
    p_out = _round_up(output_size, LANE)

    # TODO(synk): on v7x, fp8 weights (MXU-supported there) would halve the
    # resident footprint and ~double MXU throughput when accuracy permits.
    def pad2(a, r, c, dtype):
        a = jnp.asarray(a).astype(dtype)          # cast first (cheaper pad copy)
        if a.shape != (r, c):                     # skip pad when already aligned
            a = jnp.pad(a, ((0, r - a.shape[0]), (0, c - a.shape[1])))
        return a

    prepared = {
        "w1": pad2(params["w1"], p_in, p_hid, compute_dtype),
        "w2": pad2(params["w2"], p_hid, p_out, compute_dtype),
        "w3": pad2(params["w3"], p_out, p_hid, compute_dtype),
        "w4": pad2(params["w4"], p_hid, p_in, compute_dtype),
        "b1": pad2(params["b1"], 1, p_hid, jnp.float32),
        "b2": pad2(params["b2"], 1, p_out, jnp.float32),
        "b3": pad2(params["b3"], 1, p_hid, jnp.float32),
        "b4": pad2(params["b4"], 1, p_in, jnp.float32),
    }
    dims = {"input_size": input_size, "hidden_size": hidden_size,
            "output_size": output_size, "p_in": p_in, "p_hid": p_hid,
            "p_out": p_out, "compute_dtype": compute_dtype}
    return prepared, dims


# --------------------------------------------------------------------------
# Forward wrapper
# --------------------------------------------------------------------------
def autoencoder_forward(x, prepared, dims, *, tile_b=None,
                        out_dtype=jnp.float32, x_buffers=3):
    """x: [B, input_size]. `prepared`/`dims` come from prepare_params()."""
    B, input_size = x.shape
    assert input_size == dims["input_size"]
    p_in, p_hid, p_out = dims["p_in"], dims["p_hid"], dims["p_out"]
    compute_dtype = dims["compute_dtype"]
    cd_size = jnp.dtype(compute_dtype).itemsize
    out_size = jnp.dtype(out_dtype).itemsize

    vmem_cap = _vmem_capacity_bytes()
    if tile_b is None:
        # v5e/v6e have 128 MiB VMEM -> bigger batch tiles; v7x (64 MiB) -> 512.
        tile_b = 1024 if vmem_cap >= 100 * _MIB else 512

    w = prepared
    bytes_resident = sum(int(a.size) * a.dtype.itemsize for a in w.values())

    def vmem_need(tb):
        x_tile = tb * p_in * cd_size                       # streamed input tile
        y_tile = tb * p_in * out_size                      # streamed output tile
        inter_f32 = tb * (2 * p_hid + p_out + p_in) * 4    # h1, z, h2, y (f32)
        inter_cast = tb * (2 * p_hid + p_out) * cd_size    # bf16 cast temporaries
        return (bytes_resident + x_buffers * x_tile + 2 * y_tile
                + inter_f32 + inter_cast)

    vmem_budget_cap = int(0.85 * vmem_cap)
    # TODO(synk): if bytes_resident alone approaches vmem_budget_cap (very large
    # hidden/input dims on v7x), stream w1/w4 in K-blocks over an extra
    # 'arbitrary' grid axis instead of keeping every weight VMEM-resident.

    # Balanced batch tiles; >= 2 grid steps when B allows so ("parallel",)
    # has something to shard across v7x's two TensorCores.
    n_tiles = _cdiv(B, tile_b)
    if B >= 32:
        n_tiles = max(n_tiles, 2)
    tb = _round_up(_cdiv(B, n_tiles), 16)          # 16 = bf16 sublane packing
    while tb > 16 and int(1.5 * vmem_need(tb)) > vmem_budget_cap:
        tb = _round_up(tb // 2, 16)
    pB = _round_up(B, tb)

    vmem_limit = int(min(vmem_budget_cap,
                         max(32 * _MIB, int(1.5 * vmem_need(tb)))))

    # Cast to the compute dtype first; pad only if needed (often a no-op).
    xp = x.astype(compute_dtype)
    if xp.shape != (pB, p_in):
        xp = jnp.pad(xp, ((0, pB - B), (0, p_in - input_size)))

    grid = (pB // tb,)

    def build_specs(use_pipeline_modes):
        if use_pipeline_modes:
            x_spec = pl.BlockSpec((tb, p_in), lambda i: (i, 0),
                                  pipeline_mode=pl.Buffered(x_buffers))

            def resident(shape):
                # Constant index_map -> DMA'd once; single buffer (no double
                # buffering of the dominant VMEM consumer).
                return pl.BlockSpec(shape, lambda i: (0, 0),
                                    pipeline_mode=pl.Buffered(1))
        else:
            x_spec = pl.BlockSpec((tb, p_in), lambda i: (i, 0))

            def resident(shape):
                return pl.BlockSpec(shape, lambda i: (0, 0))

        o_spec = pl.BlockSpec((tb, p_in), lambda i: (i, 0))
        in_specs = [x_spec,
                    resident((p_in, p_hid)), resident((1, p_hid)),
                    resident((p_hid, p_out)), resident((1, p_out)),
                    resident((p_out, p_hid)), resident((1, p_hid)),
                    resident((p_hid, p_in)), resident((1, p_in))]
        return in_specs, o_spec

    flops = 4 * pB * (p_in * p_hid + p_hid * p_out)
    bytes_accessed = pB * p_in * (cd_size + out_size) + bytes_resident
    cost = pl.CostEstimate(flops=flops, transcendentals=0,
                           bytes_accessed=bytes_accessed)

    def run(use_pipeline_modes):
        in_specs, o_spec = build_specs(use_pipeline_modes)
        return pl.pallas_call(
            autoencoder_kernel,
            out_shape=jax.ShapeDtypeStruct((pB, p_in), out_dtype),
            grid=grid,
            in_specs=in_specs,
            out_specs=o_spec,
            compiler_params=pltpu.CompilerParams(
                dimension_semantics=("parallel",),
                vmem_limit_bytes=vmem_limit),
            cost_estimate=cost,
        )(xp, w["w1"], w["b1"], w["w2"], w["b2"],
          w["w3"], w["b3"], w["w4"], w["b4"])

    try:
        out_padded = run(True)
    except Exception:
        # pipeline_mode / Buffered support can vary across JAX versions; the
        # plain specs are identical semantically, just heavier on VMEM.
        out_padded = run(False)

    return out_padded[:B, :input_size]


# --------------------------------------------------------------------------
# Init + references + self-check
# --------------------------------------------------------------------------
def init_params(key, input_size, hidden_size, output_size):
    """Deterministic init. Weights stored transposed: [in_features, out_features]."""
    ks = jax.random.split(key, 8)

    def linear(kw, kb, fan_in, fan_out):
        # mimic nn.Linear default: U(-1/sqrt(fan_in), 1/sqrt(fan_in))
        bound = 1.0 / jnp.sqrt(jnp.float32(fan_in))
        w = jax.random.uniform(kw, (fan_in, fan_out), jnp.float32, -bound, bound)
        b = jax.random.uniform(kb, (1, fan_out), jnp.float32, -bound, bound)
        return w, b

    w1, b1 = linear(ks[0], ks[1], input_size, hidden_size)    # encoder.layer_1
    w2, b2 = linear(ks[2], ks[3], hidden_size, output_size)   # encoder.layer_out
    w3, b3 = linear(ks[4], ks[5], output_size, hidden_size)   # decoder.layer_1
    w4, b4 = linear(ks[6], ks[7], hidden_size, input_size)    # decoder.layer_out
    return {"w1": w1, "b1": b1, "w2": w2, "b2": b2,
            "w3": w3, "b3": b3, "w4": w4, "b4": b4}


def reference_forward_f32(x, p):
    h1 = jnp.maximum(x @ p["w1"] + p["b1"], 0.0)
    z = h1 @ p["w2"] + p["b2"]
    h2 = jnp.maximum(z @ p["w3"] + p["b3"], 0.0)
    return h2 @ p["w4"] + p["b4"]


def reference_forward_mixed(x, p, compute_dtype=jnp.bfloat16):
    """Same bf16-matmul / f32-accumulate recipe as the kernel."""
    cd = compute_dtype

    def lin(a, w, b):
        return jnp.dot(a.astype(cd), w.astype(cd),
                       preferred_element_type=jnp.float32) + b

    h1 = jnp.maximum(lin(x, p["w1"], p["b1"]), 0.0)
    z = lin(h1, p["w2"], p["b2"])
    h2 = jnp.maximum(lin(z, p["w3"], p["b3"]), 0.0)
    return lin(h2, p["w4"], p["b4"])


def _check(batch, input_size, hidden_size, output_size, seed):
    key = jax.random.PRNGKey(seed)
    k_x, k_p = jax.random.split(key)
    x = jax.random.normal(k_x, (batch, input_size), jnp.float32)
    params = init_params(k_p, input_size, hidden_size, output_size)
    prepared, dims = prepare_params(params)   # pad/cast once (cacheable)

    out = jax.block_until_ready(autoencoder_forward(x, prepared, dims))
    assert out.shape == (batch, input_size)

    ref_mixed = reference_forward_mixed(x, params)
    ref_f32 = reference_forward_f32(x, params)
    assert jnp.allclose(out, ref_mixed, atol=1e-3, rtol=1e-3), "mixed-precision mismatch"
    assert jnp.allclose(out, ref_f32, atol=5e-2, rtol=5e-2), "f32 semantic mismatch"

    # Exercise the bf16-output path (halves writeback traffic on v5e).
    out_bf16 = jax.block_until_ready(
        autoencoder_forward(x, prepared, dims, out_dtype=jnp.bfloat16))
    assert out_bf16.shape == (batch, input_size)
    assert jnp.allclose(out_bf16.astype(jnp.float32), ref_mixed,
                        atol=5e-2, rtol=5e-2), "bf16-output mismatch"
    return out


if __name__ == "__main__":
    # Primary small shape consistent with the module's forward.
    _check(batch=8, input_size=32, hidden_size=64, output_size=16, seed=0)
    # Ragged batch / odd feature sizes exercise the padding + 2-step grid paths.
    _check(batch=37, input_size=20, hidden_size=50, output_size=10, seed=0)

    print("KERNEL_OK")
</pallas_src>

<mosaic_0001>
module attributes {stable_mosaic.version = 11 : i64} {
  func.func @autoencoder_kernel(%arg0: i32, %arg1: memref<16x128xbf16, #tpu.memory_space<vmem>>, %arg2: memref<128x128xbf16, #tpu.memory_space<vmem>>, %arg3: memref<1x128xf32, #tpu.memory_space<vmem>>, %arg4: memref<128x128xbf16, #tpu.memory_space<vmem>>, %arg5: memref<1x128xf32, #tpu.memory_space<vmem>>, %arg6: memref<128x128xbf16, #tpu.memory_space<vmem>>, %arg7: memref<1x128xf32, #tpu.memory_space<vmem>>, %arg8: memref<128x128xbf16, #tpu.memory_space<vmem>>, %arg9: memref<1x128xf32, #tpu.memory_space<vmem>>, %arg10: memref<16x128xf32, #tpu.memory_space<vmem>>) attributes {dimension_semantics = [#tpu.dimension_semantics<parallel>], iteration_bounds = array<i64: 1>, scalar_prefetch = 0 : i64, scratch_operands = 0 : i64, tpu.core_type = #tpu.core_type<tc>, window_params = [{transform_indices = @transform_0, window_bounds = array<i64: 16, 128>}, {pipeline_mode = #tpu.pipeline_mode<synchronous>, transform_indices = @transform_1, window_bounds = array<i64: 128, 128>}, {pipeline_mode = #tpu.pipeline_mode<synchronous>, transform_indices = @transform_2, window_bounds = array<i64: 1, 128>}, {pipeline_mode = #tpu.pipeline_mode<synchronous>, transform_indices = @transform_3, window_bounds = array<i64: 128, 128>}, {pipeline_mode = #tpu.pipeline_mode<synchronous>, transform_indices = @transform_4, window_bounds = array<i64: 1, 128>}, {pipeline_mode = #tpu.pipeline_mode<synchronous>, transform_indices = @transform_5, window_bounds = array<i64: 128, 128>}, {pipeline_mode = #tpu.pipeline_mode<synchronous>, transform_indices = @transform_6, window_bounds = array<i64: 1, 128>}, {pipeline_mode = #tpu.pipeline_mode<synchronous>, transform_indices = @transform_7, window_bounds = array<i64: 128, 128>}, {pipeline_mode = #tpu.pipeline_mode<synchronous>, transform_indices = @transform_8, window_bounds = array<i64: 1, 128>}, {transform_indices = @transform_9, window_bounds = array<i64: 16, 128>}]} {
    %c0 = arith.constant 0 : index
    %c0_0 = arith.constant 0 : index
    %0 = vector.load %arg1[%c0, %c0_0] : memref<16x128xbf16, #tpu.memory_space<vmem>>, vector<16x128xbf16>
    %c0_1 = arith.constant 0 : index
    %c0_2 = arith.constant 0 : index
    %1 = vector.load %arg2[%c0_1, %c0_2] : memref<128x128xbf16, #tpu.memory_space<vmem>>, vector<128x128xbf16>
    %cst = arith.constant dense<0.000000e+00> : vector<16x128xf32>
    %2 = tpu.matmul %0, %1, %cst {dimension_numbers = #tpu.dot_dimension_numbers<[1], [0], [0], [1], [0, 0, 1, 1], [], []>} : vector<16x128xbf16>, vector<128x128xbf16>, vector<16x128xf32> -> vector<16x128xf32>
    %c0_3 = arith.constant 0 : index
    %c0_4 = arith.constant 0 : index
    %3 = vector.load %arg3[%c0_3, %c0_4] : memref<1x128xf32, #tpu.memory_space<vmem>>, vector<1x128xf32>
    %4 = vector.broadcast %3 : vector<1x128xf32> to vector<16x128xf32>
    %5 = arith.addf %2, %4 : vector<16x128xf32>
    %cst_5 = arith.constant 0.000000e+00 : f32
    %6 = vector.broadcast %cst_5 : f32 to vector<16x128xf32>
    %7 = arith.maximumf %5, %6 : vector<16x128xf32>
    %8 = arith.truncf %7 : vector<16x128xf32> to vector<16x128xbf16>
    %c0_6 = arith.constant 0 : index
    %c0_7 = arith.constant 0 : index
    %9 = vector.load %arg4[%c0_6, %c0_7] : memref<128x128xbf16, #tpu.memory_space<vmem>>, vector<128x128xbf16>
    %cst_8 = arith.constant dense<0.000000e+00> : vector<16x128xf32>
    %10 = tpu.matmul %8, %9, %cst_8 {dimension_numbers = #tpu.dot_dimension_numbers<[1], [0], [0], [1], [0, 0, 1, 1], [], []>} : vector<16x128xbf16>, vector<128x128xbf16>, vector<16x128xf32> -> vector<16x128xf32>
    %c0_9 = arith.constant 0 : index
    %c0_10 = arith.constant 0 : index
    %11 = vector.load %arg5[%c0_9, %c0_10] : memref<1x128xf32, #tpu.memory_space<vmem>>, vector<1x128xf32>
    %12 = vector.broadcast %11 : vector<1x128xf32> to vector<16x128xf32>
    %13 = arith.addf %10, %12 : vector<16x128xf32>
    %14 = arith.truncf %13 : vector<16x128xf32> to vector<16x128xbf16>
    %c0_11 = arith.constant 0 : index
    %c0_12 = arith.constant 0 : index
    %15 = vector.load %arg6[%c0_11, %c0_12] : memref<128x128xbf16, #tpu.memory_space<vmem>>, vector<128x128xbf16>
    %cst_13 = arith.constant dense<0.000000e+00> : vector<16x128xf32>
    %16 = tpu.matmul %14, %15, %cst_13 {dimension_numbers = #tpu.dot_dimension_numbers<[1], [0], [0], [1], [0, 0, 1, 1], [], []>} : vector<16x128xbf16>, vector<128x128xbf16>, vector<16x128xf32> -> vector<16x128xf32>
    %c0_14 = arith.constant 0 : index
    %c0_15 = arith.constant 0 : index
    %17 = vector.load %arg7[%c0_14, %c0_15] : memref<1x128xf32, #tpu.memory_space<vmem>>, vector<1x128xf32>
    %18 = vector.broadcast %17 : vector<1x128xf32> to vector<16x128xf32>
    %19 = arith.addf %16, %18 : vector<16x128xf32>
    %cst_16 = arith.constant 0.000000e+00 : f32
    %20 = vector.broadcast %cst_16 : f32 to vector<16x128xf32>
    %21 = arith.maximumf %19, %20 : vector<16x128xf32>
    %22 = arith.truncf %21 : vector<16x128xf32> to vector<16x128xbf16>
    %c0_17 = arith.constant 0 : index
    %c0_18 = arith.constant 0 : index
    %23 = vector.load %arg8[%c0_17, %c0_18] : memref<128x128xbf16, #tpu.memory_space<vmem>>, vector<128x128xbf16>
    %cst_19 = arith.constant dense<0.000000e+00> : vector<16x128xf32>
    %24 = tpu.matmul %22, %23, %cst_19 {dimension_numbers = #tpu.dot_dimension_numbers<[1], [0], [0], [1], [0, 0, 1, 1], [], []>} : vector<16x128xbf16>, vector<128x128xbf16>, vector<16x128xf32> -> vector<16x128xf32>
    %c0_20 = arith.constant 0 : index
    %c0_21 = arith.constant 0 : index
    %25 = vector.load %arg9[%c0_20, %c0_21] : memref<1x128xf32, #tpu.memory_space<vmem>>, vector<1x128xf32>
    %26 = vector.broadcast %25 : vector<1x128xf32> to vector<16x128xf32>
    %27 = arith.addf %24, %26 : vector<16x128xf32>
    %c0_22 = arith.constant 0 : index
    %c0_23 = arith.constant 0 : index
    %28 = vector.load %arg10[%c0_22, %c0_23] : memref<16x128xf32, #tpu.memory_space<vmem>>, vector<16x128xf32>
    tpu.vector_store %arg10[%c0_22, %c0_23], %27 {strides = array<i32>} : memref<16x128xf32, #tpu.memory_space<vmem>>, vector<16x128xf32>,
    return
  }
  func.func @transform_0(%arg0: i32) -> (i32, i32) {
    %c0_i32 = arith.constant 0 : i32
    %c0_i32_0 = arith.constant 0 : i32
    return %arg0, %c0_i32 : i32, i32
  }
  func.func @transform_1(%arg0: i32) -> (i32, i32) {
    %c0_i32 = arith.constant 0 : i32
    %c0_i32_0 = arith.constant 0 : i32
    %c0_i32_1 = arith.constant 0 : i32
    return %c0_i32, %c0_i32_0 : i32, i32
  }
  func.func @transform_2(%arg0: i32) -> (i32, i32) {
    %c0_i32 = arith.constant 0 : i32
    %c0_i32_0 = arith.constant 0 : i32
    %c0_i32_1 = arith.constant 0 : i32
    return %c0_i32, %c0_i32_0 : i32, i32
  }
  func.func @transform_3(%arg0: i32) -> (i32, i32) {
    %c0_i32 = arith.constant 0 : i32
    %c0_i32_0 = arith.constant 0 : i32
    %c0_i32_1 = arith.constant 0 : i32
    return %c0_i32, %c0_i32_0 : i32, i32
  }
  func.func @transform_4(%arg0: i32) -> (i32, i32) {
    %c0_i32 = arith.constant 0 : i32
    %c0_i32_0 = arith.constant 0 : i32
    %c0_i32_1 = arith.constant 0 : i32
    return %c0_i32, %c0_i32_0 : i32, i32
  }
  func.func @transform_5(%arg0: i32) -> (i32, i32) {
    %c0_i32 = arith.constant 0 : i32
    %c0_i32_0 = arith.constant 0 : i32
    %c0_i32_1 = arith.constant 0 : i32
    return %c0_i32, %c0_i32_0 : i32, i32
  }
  func.func @transform_6(%arg0: i32) -> (i32, i32) {
    %c0_i32 = arith.constant 0 : i32
    %c0_i32_0 = arith.constant 0 : i32
    %c0_i32_1 = arith.constant 0 : i32
    return %c0_i32, %c0_i32_0 : i32, i32
  }
  func.func @transform_7(%arg0: i32) -> (i32, i32) {
    %c0_i32 = arith.constant 0 : i32
    %c0_i32_0 = arith.constant 0 : i32
    %c0_i32_1 = arith.constant 0 : i32
    return %c0_i32, %c0_i32_0 : i32, i32
  }
  func.func @transform_8(%arg0: i32) -> (i32, i32) {
    %c0_i32 = arith.constant 0 : i32
    %c0_i32_0 = arith.constant 0 : i32
    %c0_i32_1 = arith.constant 0 : i32
    return %c0_i32, %c0_i32_0 : i32, i32
  }
  func.func @transform_9(%arg0: i32) -> (i32, i32) {
    %c0_i32 = arith.constant 0 : i32
    %c0_i32_0 = arith.constant 0 : i32
    return %arg0, %c0_i32 : i32, i32
  }
}

</mosaic_0001>

<llo_original>
// kernel: tpu_custom_call.1
$region0: #{tpu_custom_call.1}
  #allocation0 [shape = 'u32[]', space=smem, size = 0x4, offset = 0x4, fixed_abs, tag = 'smem constant byte address 0x4 - core index']
  #allocation1 [shape = 'u32[144,128]{1,0:T(1,128)}', space=vmem, size = 0x12000, scoped, tag = 'internal scratch']
  %s0 = inlined_call_operand.hbm [shape: bf16[16,128], index: 0, kind: input, shape index: {}]
  %s1 = inlined_call_operand.hbm [shape: bf16[128,128], index: 1, kind: input, shape index: {}]
  %s2 = inlined_call_operand.vmem [shape: f32[1,128], index: 2, kind: input, shape index: {}]
  %s3 = inlined_call_operand.hbm [shape: bf16[128,128], index: 3, kind: input, shape index: {}]
  %s4 = inlined_call_operand.vmem [shape: f32[1,128], index: 4, kind: input, shape index: {}]
  %s5 = inlined_call_operand.hbm [shape: bf16[128,128], index: 5, kind: input, shape index: {}]
  %s6 = inlined_call_operand.vmem [shape: f32[1,128], index: 6, kind: input, shape index: {}]
  %s7 = inlined_call_operand.hbm [shape: bf16[128,128], index: 7, kind: input, shape index: {}]
  %s8 = inlined_call_operand.vmem [shape: f32[1,128], index: 8, kind: input, shape index: {}]
  %s9 = inlined_call_operand.hbm [shape: f32[16,128], index: 9, kind: output, shape index: {}]
  %s10 = sld [smem:[#allocation0]]
  $region66: #{tpu_custom_call.1} parent=0
    _
  %s12 = ssub.s32 1, %s10
  %s13 = scalar_select 0, %s12, %s10
  $region1: #{tpu_custom_call.1} parent=0
    #allocation2 [shape = 'u8[4096]{0}', space=vmem, size = 0x1000, scoped, tag = 'input window, operand 0, single buffered']
    #allocation3 [shape = 's32[1]{0}', space=sflag, size = 0x4, scoped, tag = 'scoped memory for tpu_custom_call.1']
    #allocation4 [shape = 's32[1]{0}', space=sflag, size = 0x4, scoped, tag = 'scoped memory for tpu_custom_call.1']
    #allocation5 [shape = 'u8[32768]{0}', space=vmem, size = 0x8000, scoped, tag = 'input window, operand 1, single buffered']
    #allocation6 [shape = 's32[1]{0}', space=sflag, size = 0x4, scoped, tag = 'scoped memory for tpu_custom_call.1']
    #allocation7 [shape = 'u8[32768]{0}', space=vmem, size = 0x8000, scoped, tag = 'input window, operand 3, single buffered']
    #allocation8 [shape = 'u8[32768]{0}', space=vmem, size = 0x8000, scoped, tag = 'input window, operand 5, single buffered']
    #allocation9 [shape = 's32[1]{0}', space=sflag, size = 0x4, scoped, tag = 'scoped memory for tpu_custom_call.1']
    #allocation10 [shape = 'u8[32768]{0}', space=vmem, size = 0x8000, scoped, tag = 'input window, operand 7, single buffered']
    #allocation11 [shape = 'u8[8192]{0}', space=vmem, size = 0x2000, scoped, tag = 'output window, operand 0, single buffered']
    %14 = vsyncpa [#allocation3], 0
    %15 = vsyncpa [#allocation6], 0
    %16 = vsyncpa [#allocation9], 0
    %17 = vsyncpa [#allocation4], 0
    // Predicated region
    $region2: #{tpu_custom_call.1} parent=1 // pred_check
      _
    $region3: #{tpu_custom_call.1} parent=1 // pred_check_branch
      %19 = sbr.rel (0) target = $region5
    $region4: #{tpu_custom_call.1} parent=1 // pred_region
      %s21 = ssub.s32 128, 128
      %22 = vsyncadd [#allocation3], %s21
      %s23 = sshll.u32 [#allocation2], 4
      %s24 = int_to_ptr.vmem [resolvable:$true] %s23
      %29 = dma.hbm_to_vmem [thread:$0]  %s0, 128, %s24, [#allocation3], 64, 64, 4
    $region5: #{tpu_custom_call.1} parent=1 // pred_fallthru
      _
    // Predicated region
    $region6: #{tpu_custom_call.1} parent=1 // pred_check
      _
    $region7: #{tpu_custom_call.1} parent=1 // pred_check_branch
      %31 = sbr.rel (0) target = $region9
    $region8: #{tpu_custom_call.1} parent=1 // pred_region
      %s33 = ssub.s32 1024, 1024
      %34 = vsyncadd [#allocation6], %s33
      %s35 = sshll.u32 [#allocation5], 4
      %s36 = int_to_ptr.vmem [resolvable:$true] %s35
      %41 = dma.hbm_to_vmem [thread:$0]  %s1, 1024, %s36, [#allocation6], 64, 64, 4
    $region9: #{tpu_custom_call.1} parent=1 // pred_fallthru
      _
    // Predicated region
    $region10: #{tpu_custom_call.1} parent=1 // pred_check
      _
    $region11: #{tpu_custom_call.1} parent=1 // pred_check_branch
      %43 = sbr.rel (0) target = $region13
    $region12: #{tpu_custom_call.1} parent=1 // pred_region
      _
    $region13: #{tpu_custom_call.1} parent=1 // pred_fallthru
      _
    // Predicated region
    $region14: #{tpu_custom_call.1} parent=1 // pred_check
      _
    $region15: #{tpu_custom_call.1} parent=1 // pred_check_branch
      %45 = sbr.rel (0) target = $region17
    $region16: #{tpu_custom_call.1} parent=1 // pred_region
      %s47 = ssub.s32 1024, 1024
      %48 = vsyncadd [#allocation6], %s47
      %s49 = sshll.u32 [#allocation7], 4
      %s50 = int_to_ptr.vmem [resolvable:$true] %s49
      %55 = dma.hbm_to_vmem [thread:$0]  %s3, 1024, %s50, [#allocation6], 64, 64, 4
    $region17: #{tpu_custom_call.1} parent=1 // pred_fallthru
      _
    // Predicated region
    $region18: #{tpu_custom_call.1} parent=1 // pred_check
      _
    $region19: #{tpu_custom_call.1} parent=1 // pred_check_branch
      %57 = sbr.rel (0) target = $region21
    $region20: #{tpu_custom_call.1} parent=1 // pred_region
      _
    $region21: #{tpu_custom_call.1} parent=1 // pred_fallthru
      _
    // Predicated region
    $region22: #{tpu_custom_call.1} parent=1 // pred_check
      _
    $region23: #{tpu_custom_call.1} parent=1 // pred_check_branch
      %59 = sbr.rel (0) target = $region25
    $region24: #{tpu_custom_call.1} parent=1 // pred_region
      %s61 = ssub.s32 1024, 1024
      %62 = vsyncadd [#allocation9], %s61
      %s63 = sshll.u32 [#allocation8], 4
      %s64 = int_to_ptr.vmem [resolvable:$true] %s63
      %69 = dma.hbm_to_vmem [thread:$0]  %s5, 1024, %s64, [#allocation9], 64, 64, 4
    $region25: #{tpu_custom_call.1} parent=1 // pred_fallthru
      _
    // Predicated region
    $region26: #{tpu_custom_call.1} parent=1 // pred_check
      _
    $region27: #{tpu_custom_call.1} parent=1 // pred_check_branch
      %71 = sbr.rel (0) target = $region29
    $region28: #{tpu_custom_call.1} parent=1 // pred_region
      _
    $region29: #{tpu_custom_call.1} parent=1 // pred_fallthru
      _
    // Predicated region
    $region30: #{tpu_custom_call.1} parent=1 // pred_check
      _
    $region31: #{tpu_custom_call.1} parent=1 // pred_check_branch
      %73 = sbr.rel (0) target = $region33
    $region32: #{tpu_custom_call.1} parent=1 // pred_region
      %s75 = ssub.s32 1024, 1024
      %76 = vsyncadd [#allocation9], %s75
      %s77 = sshll.u32 [#allocation10], 4
      %s78 = int_to_ptr.vmem [resolvable:$true] %s77
      %83 = dma.hbm_to_vmem [thread:$0]  %s7, 1024, %s78, [#allocation9], 64, 64, 4
    $region33: #{tpu_custom_call.1} parent=1 // pred_fallthru
      _
    // Predicated region
    $region34: #{tpu_custom_call.1} parent=1 // pred_check
      _
    $region35: #{tpu_custom_call.1} parent=1 // pred_check_branch
      %85 = sbr.rel (0) target = $region37
    $region36: #{tpu_custom_call.1} parent=1 // pred_region
      _
    $region37: #{tpu_custom_call.1} parent=1 // pred_fallthru
      _
    // Predicated region
    $region38: #{tpu_custom_call.1} parent=1 // pred_check
      _
    $region39: #{tpu_custom_call.1} parent=1 // pred_check_branch
      %87 = sbr.rel (0) target = $region41
    $region40: #{tpu_custom_call.1} parent=1 // pred_region
      %88 = dma.done [#allocation3], 128
    $region41: #{tpu_custom_call.1} parent=1 // pred_fallthru
      _
    // Predicated region
    $region42: #{tpu_custom_call.1} parent=1 // pred_check
      _
    $region43: #{tpu_custom_call.1} parent=1 // pred_check_branch
      %90 = sbr.rel (0) target = $region45
    $region44: #{tpu_custom_call.1} parent=1 // pred_region
      %91 = dma.done [#allocation6], 1024
    $region45: #{tpu_custom_call.1} parent=1 // pred_fallthru
      _
    // Predicated region
    $region46: #{tpu_custom_call.1} parent=1 // pred_check
      _
    $region47: #{tpu_custom_call.1} parent=1 // pred_check_branch
      %93 = sbr.rel (0) target = $region49
    $region48: #{tpu_custom_call.1} parent=1 // pred_region
      %94 = dma.done [#allocation6], 1024
    $region49: #{tpu_custom_call.1} parent=1 // pred_fallthru
      _
    // Predicated region
    $region50: #{tpu_custom_call.1} parent=1 // pred_check
      _
    $region51: #{tpu_custom_call.1} parent=1 // pred_check_branch
      %96 = sbr.rel (0) target = $region53
    $region52: #{tpu_custom_call.1} parent=1 // pred_region
      %97 = dma.done [#allocation9], 1024
    $region53: #{tpu_custom_call.1} parent=1 // pred_fallthru
      _
    // Predicated region
    $region54: #{tpu_custom_call.1} parent=1 // pred_check
      _
    $region55: #{tpu_custom_call.1} parent=1 // pred_check_branch
      %99 = sbr.rel (0) target = $region57
    $region56: #{tpu_custom_call.1} parent=1 // pred_region
      %100 = dma.done [#allocation9], 1024
    $region57: #{tpu_custom_call.1} parent=1 // pred_fallthru
      _
    %v102 = vld [vmem:[#allocation2] sm:$0xf]
    %v103 = vld [vmem:[#allocation2 + $0x4] sm:$0xf]
    %v104 = vld [vmem:[#allocation5] sm:$0xf]
    %v105 = vld [vmem:[#allocation5 + $0x4] sm:$0xf]
    %v106 = vld [vmem:[#allocation5 + $0x8] sm:$0xf]
    %v107 = vld [vmem:[#allocation5 + $0xc] sm:$0xf]
    %v108 = vld [vmem:[#allocation5 + $0x10] sm:$0xf]
    %v109 = vld [vmem:[#allocation5 + $0x14] sm:$0xf]
    %v110 = vld [vmem:[#allocation5 + $0x18] sm:$0xf]
    %v111 = vld [vmem:[#allocation5 + $0x1c] sm:$0xf]
    %v112 = vld [vmem:[#allocation5 + $0x20] sm:$0xf]
    %v113 = vld [vmem:[#allocation5 + $0x24] sm:$0xf]
    %v114 = vld [vmem:[#allocation5 + $0x28] sm:$0xf]
    %v115 = vld [vmem:[#allocation5 + $0x2c] sm:$0xf]
    %v116 = vld [vmem:[#allocation5 + $0x30] sm:$0xf]
    %v117 = vld [vmem:[#allocation5 + $0x34] sm:$0xf]
    %v118 = vld [vmem:[#allocation5 + $0x38] sm:$0xf]
    %v119 = vld [vmem:[#allocation5 + $0x3c] sm:$0xf]
    %v120 = vld [vmem:[%s2] sm:$0x1]
    %v122 = vlaneseq
    %v123 = vshrl.u32 %v122, 7
    %v124 = vsub.s32 0, %v123
    %v125 = vrot.slane %v120, %v124
    %v129 = vunpack.c.l.b16 %v102
    %v130 = vunpack.c.l.b16 %v103
    %v131 = vpack.c.b16 %v130, %v129
    %v149 = vunpack.c.l.b16 %v104
    %v150 = vunpack.c.l.b16 %v105
    %v151 = vunpack.c.l.b16 %v106
    %v152 = vunpack.c.l.b16 %v107
    %v153 = vunpack.c.l.b16 %v108
    %v154 = vunpack.c.l.b16 %v109
    %v155 = vunpack.c.l.b16 %v110
    %v156 = vunpack.c.l.b16 %v111
    %v157 = vunpack.c.l.b16 %v112
    %v158 = vunpack.c.l.b16 %v113
    %v159 = vunpack.c.l.b16 %v114
    %v160 = vunpack.c.l.b16 %v115
    %v161 = vunpack.c.l.b16 %v116
    %v162 = vunpack.c.l.b16 %v117
    %v163 = vunpack.c.l.b16 %v118
    %v164 = vunpack.c.l.b16 %v119
    %v165 = vpack.c.b16 %v150, %v149
    %v166 = vpack.c.b16 %v152, %v151
    %v167 = vpack.c.b16 %v154, %v153
    %v168 = vpack.c.b16 %v156, %v155
    %v169 = vpack.c.b16 %v158, %v157
    %v170 = vpack.c.b16 %v160, %v159
    %v171 = vpack.c.b16 %v162, %v161
    %v172 = vpack.c.b16 %v164, %v163
    %181 = vmatprep.subr.bf16.mxu0 0
    %182 = vmatpush1.bf16.msra.mxu0 %v172
    %183 = vmatprep.subr.bf16.mxu0 0
    %184 = vmatpush1.bf16.msra.mxu0 %v171
    %185 = vmatprep.subr.bf16.mxu0 0
    %186 = vmatpush1.bf16.msra.mxu0 %v170
    %187 = vmatprep.subr.bf16.mxu0 0
    %188 = vmatpush1.bf16.msra.mxu0 %v169
    %189 = vmatprep.subr.bf16.mxu0 0
    %190 = vmatpush1.bf16.msra.mxu0 %v168
    %191 = vmatprep.subr.bf16.mxu0 0
    %192 = vmatpush1.bf16.msra.mxu0 %v167
    %193 = vmatprep.subr.bf16.mxu0 0
    %194 = vmatpush1.bf16.msra.mxu0 %v166
    %195 = vmatprep.subr.bf16.mxu0 0
    %196 = vmatpush1.bf16.msra.mxu0 %v165
    %197 = vmatprep.subr.bf16.mxu0 0
    %198 = vmatpush2.bf16.msra.mxu0 0
    %199 = vmatprep.subr.bf16.mxu0 0
    %200 = vmatpush2.bf16.msra.mxu0 0
    %201 = vmatprep.subr.bf16.mxu0 0
    %202 = vmatpush2.bf16.msra.mxu0 0
    %203 = vmatprep.subr.bf16.mxu0 0
    %204 = vmatpush2.bf16.msra.mxu0 0
    %205 = vmatprep.subr.bf16.mxu0 0
    %206 = vmatpush2.bf16.msra.mxu0 0
    %207 = vmatprep.subr.bf16.mxu0 0
    %208 = vmatpush2.bf16.msra.mxu0 0
    %209 = vmatprep.subr.bf16.mxu0 0
    %210 = vmatpush2.bf16.msra.mxu0 0
    %211 = vmatprep.subr.bf16.mxu0 0
    %212 = vmatpush2.bf16.msra.mxu0 0
    %213 = vmatprep.mubr.bf16.mxu0 0
    %214 = vmatmul.mubr.bf16.gmra.mxu0 %v131
    %v215 = vpop.f32.mrf.mxu0
    %v216 = vadd.f32 %v125, %v215
    %v217 = vpop.f32.mrf.mxu0
    %v218 = vpop.f32.mrf.mxu0
    %v219 = vadd.f32 %v125, %v218
    %v220 = vpop.f32.mrf.mxu0
    %221 = vdwg.mxu0
    %v222 = vmax.f32 %v216, 0.0
    %v223 = vmax.f32 %v219, 0.0
    %v224 = vpack.c.bf16 %v223, %v222
    %v225 = vld [vmem:[#allocation7] sm:$0xf]
    %v226 = vld [vmem:[#allocation7 + $0x4] sm:$0xf]
    %v227 = vld [vmem:[#allocation7 + $0x8] sm:$0xf]
    %v228 = vld [vmem:[#allocation7 + $0xc] sm:$0xf]
    %v229 = vld [vmem:[#allocation7 + $0x10] sm:$0xf]
    %v230 = vld [vmem:[#allocation7 + $0x14] sm:$0xf]
    %v231 = vld [vmem:[#allocation7 + $0x18] sm:$0xf]
    %v232 = vld [vmem:[#allocation7 + $0x1c] sm:$0xf]
    %v233 = vld [vmem:[#allocation7 + $0x20] sm:$0xf]
    %v234 = vld [vmem:[#allocation7 + $0x24] sm:$0xf]
    %v235 = vld [vmem:[#allocation7 + $0x28] sm:$0xf]
    %v236 = vld [vmem:[#allocation7 + $0x2c] sm:$0xf]
    %v237 = vld [vmem:[#allocation7 + $0x30] sm:$0xf]
    %v238 = vld [vmem:[#allocation7 + $0x34] sm:$0xf]
    %v239 = vld [vmem:[#allocation7 + $0x38] sm:$0xf]
    %v240 = vld [vmem:[#allocation7 + $0x3c] sm:$0xf]
    %v241 = vld [vmem:[%s4] sm:$0x1]
    %v243 = vlaneseq
    %v244 = vshrl.u32 %v243, 7
    %v245 = vsub.s32 0, %v244
    %v246 = vrot.slane %v241, %v245
    %v264 = vunpack.c.l.b16 %v225
    %v265 = vunpack.c.l.b16 %v226
    %v266 = vunpack.c.l.b16 %v227
    %v267 = vunpack.c.l.b16 %v228
    %v268 = vunpack.c.l.b16 %v229
    %v269 = vunpack.c.l.b16 %v230
    %v270 = vunpack.c.l.b16 %v231
    %v271 = vunpack.c.l.b16 %v232
    %v272 = vunpack.c.l.b16 %v233
    %v273 = vunpack.c.l.b16 %v234
    %v274 = vunpack.c.l.b16 %v235
    %v275 = vunpack.c.l.b16 %v236
    %v276 = vunpack.c.l.b16 %v237
    %v277 = vunpack.c.l.b16 %v238
    %v278 = vunpack.c.l.b16 %v239
    %v279 = vunpack.c.l.b16 %v240
    %v280 = vpack.c.b16 %v265, %v264
    %v281 = vpack.c.b16 %v267, %v266
    %v282 = vpack.c.b16 %v269, %v268
    %v283 = vpack.c.b16 %v271, %v270
    %v284 = vpack.c.b16 %v273, %v272
    %v285 = vpack.c.b16 %v275, %v274
    %v286 = vpack.c.b16 %v277, %v276
    %v287 = vpack.c.b16 %v279, %v278
    %296 = vmatprep.subr.bf16.mxu0 0
    %297 = vmatpush1.bf16.msra.mxu0 %v287
    %298 = vmatprep.subr.bf16.mxu0 0
    %299 = vmatpush1.bf16.msra.mxu0 %v286
    %300 = vmatprep.subr.bf16.mxu0 0
    %301 = vmatpush1.bf16.msra.mxu0 %v285
    %302 = vmatprep.subr.bf16.mxu0 0
    %303 = vmatpush1.bf16.msra.mxu0 %v284
    %304 = vmatprep.subr.bf16.mxu0 0
    %305 = vmatpush1.bf16.msra.mxu0 %v283
    %306 = vmatprep.subr.bf16.mxu0 0
    %307 = vmatpush1.bf16.msra.mxu0 %v282
    %308 = vmatprep.subr.bf16.mxu0 0
    %309 = vmatpush1.bf16.msra.mxu0 %v281
    %310 = vmatprep.subr.bf16.mxu0 0
    %311 = vmatpush1.bf16.msra.mxu0 %v280
    %312 = vmatprep.subr.bf16.mxu0 0
    %313 = vmatpush2.bf16.msra.mxu0 0
    %314 = vmatprep.subr.bf16.mxu0 0
    %315 = vmatpush2.bf16.msra.mxu0 0
    %316 = vmatprep.subr.bf16.mxu0 0
    %317 = vmatpush2.bf16.msra.mxu0 0
    %318 = vmatprep.subr.bf16.mxu0 0
    %319 = vmatpush2.bf16.msra.mxu0 0
    %320 = vmatprep.subr.bf16.mxu0 0
    %321 = vmatpush2.bf16.msra.mxu0 0
    %322 = vmatprep.subr.bf16.mxu0 0
    %323 = vmatpush2.bf16.msra.mxu0 0
    %324 = vmatprep.subr.bf16.mxu0 0
    %325 = vmatpush2.bf16.msra.mxu0 0
    %326 = vmatprep.subr.bf16.mxu0 0
    %327 = vmatpush2.bf16.msra.mxu0 0
    %328 = vmatprep.mubr.bf16.mxu0 0
    %329 = vmatmul.mubr.bf16.gmra.mxu0 %v224
    %v330 = vpop.f32.mrf.mxu0
    %v331 = vadd.f32 %v246, %v330
    %v332 = vpop.f32.mrf.mxu0
    %v333 = vpop.f32.mrf.mxu0
    %v334 = vadd.f32 %v246, %v333
    %v335 = vpop.f32.mrf.mxu0
    %336 = vdwg.mxu0
    %v337 = vpack.c.bf16 %v334, %v331
    %v338 = vld [vmem:[#allocation8] sm:$0xf]
    %v339 = vld [vmem:[#allocation8 + $0x4] sm:$0xf]
    %v340 = vld [vmem:[#allocation8 + $0x8] sm:$0xf]
    %v341 = vld [vmem:[#allocation8 + $0xc] sm:$0xf]
    %v342 = vld [vmem:[#allocation8 + $0x10] sm:$0xf]
    %v343 = vld [vmem:[#allocation8 + $0x14] sm:$0xf]
    %v344 = vld [vmem:[#allocation8 + $0x18] sm:$0xf]
    %v345 = vld [vmem:[#allocation8 + $0x1c] sm:$0xf]
    %v346 = vld [vmem:[#allocation8 + $0x20] sm:$0xf]
    %v347 = vld [vmem:[#allocation8 + $0x24] sm:$0xf]
    %v348 = vld [vmem:[#allocation8 + $0x28] sm:$0xf]
    %v349 = vld [vmem:[#allocation8 + $0x2c] sm:$0xf]
    %v350 = vld [vmem:[#allocation8 + $0x30] sm:$0xf]
    %v351 = vld [vmem:[#allocation8 + $0x34] sm:$0xf]
    %v352 = vld [vmem:[#allocation8 + $0x38] sm:$0xf]
    %v353 = vld [vmem:[#allocation8 + $0x3c] sm:$0xf]
    %v354 = vld [vmem:[%s6] sm:$0x1]
    %v356 = vlaneseq
    %v357 = vshrl.u32 %v356, 7
    %v358 = vsub.s32 0, %v357
    %v359 = vrot.slane %v354, %v358
    %v377 = vunpack.c.l.b16 %v338
    %v378 = vunpack.c.l.b16 %v339
    %v379 = vunpack.c.l.b16 %v340
    %v380 = vunpack.c.l.b16 %v341
    %v381 = vunpack.c.l.b16 %v342
    %v382 = vunpack.c.l.b16 %v343
    %v383 = vunpack.c.l.b16 %v344
    %v384 = vunpack.c.l.b16 %v345
    %v385 = vunpack.c.l.b16 %v346
    %v386 = vunpack.c.l.b16 %v347
    %v387 = vunpack.c.l.b16 %v348
    %v388 = vunpack.c.l.b16 %v349
    %v389 = vunpack.c.l.b16 %v350
    %v390 = vunpack.c.l.b16 %v351
    %v391 = vunpack.c.l.b16 %v352
    %v392 = vunpack.c.l.b16 %v353
    %v393 = vpack.c.b16 %v378, %v377
    %v394 = vpack.c.b16 %v380, %v379
    %v395 = vpack.c.b16 %v382, %v381
    %v396 = vpack.c.b16 %v384, %v383
    %v397 = vpack.c.b16 %v386, %v385
    %v398 = vpack.c.b16 %v388, %v387
    %v399 = vpack.c.b16 %v390, %v389
    %v400 = vpack.c.b16 %v392, %v391
    %409 = vmatprep.subr.bf16.mxu0 0
    %410 = vmatpush1.bf16.msra.mxu0 %v400
    %411 = vmatprep.subr.bf16.mxu0 0
    %412 = vmatpush1.bf16.msra.mxu0 %v399
    %413 = vmatprep.subr.bf16.mxu0 0
    %414 = vmatpush1.bf16.msra.mxu0 %v398
    %415 = vmatprep.subr.bf16.mxu0 0
    %416 = vmatpush1.bf16.msra.mxu0 %v397
    %417 = vmatprep.subr.bf16.mxu0 0
    %418 = vmatpush1.bf16.msra.mxu0 %v396
    %419 = vmatprep.subr.bf16.mxu0 0
    %420 = vmatpush1.bf16.msra.mxu0 %v395
    %421 = vmatprep.subr.bf16.mxu0 0
    %422 = vmatpush1.bf16.msra.mxu0 %v394
    %423 = vmatprep.subr.bf16.mxu0 0
    %424 = vmatpush1.bf16.msra.mxu0 %v393
    %425 = vmatprep.subr.bf16.mxu0 0
    %426 = vmatpush2.bf16.msra.mxu0 0
    %427 = vmatprep.subr.bf16.mxu0 0
    %428 = vmatpush2.bf16.msra.mxu0 0
    %429 = vmatprep.subr.bf16.mxu0 0
    %430 = vmatpush2.bf16.msra.mxu0 0
    %431 = vmatprep.subr.bf16.mxu0 0
    %432 = vmatpush2.bf16.msra.mxu0 0
    %433 = vmatprep.subr.bf16.mxu0 0
    %434 = vmatpush2.bf16.msra.mxu0 0
    %435 = vmatprep.subr.bf16.mxu0 0
    %436 = vmatpush2.bf16.msra.mxu0 0
    %437 = vmatprep.subr.bf16.mxu0 0
    %438 = vmatpush2.bf16.msra.mxu0 0
    %439 = vmatprep.subr.bf16.mxu0 0
    %440 = vmatpush2.bf16.msra.mxu0 0
    %441 = vmatprep.mubr.bf16.mxu0 0
    %442 = vmatmul.mubr.bf16.gmra.mxu0 %v337
    %v443 = vpop.f32.mrf.mxu0
    %v444 = vadd.f32 %v359, %v443
    %v445 = vpop.f32.mrf.mxu0
    %v446 = vpop.f32.mrf.mxu0
    %v447 = vadd.f32 %v359, %v446
    %v448 = vpop.f32.mrf.mxu0
    %449 = vdwg.mxu0
    %v450 = vmax.f32 %v444, 0.0
    %v451 = vmax.f32 %v447, 0.0
    %v452 = vpack.c.bf16 %v451, %v450
    %v453 = vld [vmem:[#allocation10] sm:$0xf]
    %v454 = vld [vmem:[#allocation10 + $0x4] sm:$0xf]
    %v455 = vld [vmem:[#allocation10 + $0x8] sm:$0xf]
    %v456 = vld [vmem:[#allocation10 + $0xc] sm:$0xf]
    %v457 = vld [vmem:[#allocation10 + $0x10] sm:$0xf]
    %v458 = vld [vmem:[#allocation10 + $0x14] sm:$0xf]
    %v459 = vld [vmem:[#allocation10 + $0x18] sm:$0xf]
    %v460 = vld [vmem:[#allocation10 + $0x1c] sm:$0xf]
    %v461 = vld [vmem:[#allocation10 + $0x20] sm:$0xf]
    %v462 = vld [vmem:[#allocation10 + $0x24] sm:$0xf]
    %v463 = vld [vmem:[#allocation10 + $0x28] sm:$0xf]
    %v464 = vld [vmem:[#allocation10 + $0x2c] sm:$0xf]
    %v465 = vld [vmem:[#allocation10 + $0x30] sm:$0xf]
    %v466 = vld [vmem:[#allocation10 + $0x34] sm:$0xf]
    %v467 = vld [vmem:[#allocation10 + $0x38] sm:$0xf]
    %v468 = vld [vmem:[#allocation10 + $0x3c] sm:$0xf]
    %v469 = vld [vmem:[%s8] sm:$0x1]
    %v471 = vlaneseq
    %v472 = vshrl.u32 %v471, 7
    %v473 = vsub.s32 0, %v472
    %v474 = vrot.slane %v469, %v473
    %v492 = vunpack.c.l.b16 %v453
    %v493 = vunpack.c.l.b16 %v454
    %v494 = vunpack.c.l.b16 %v455
    %v495 = vunpack.c.l.b16 %v456
    %v496 = vunpack.c.l.b16 %v457
    %v497 = vunpack.c.l.b16 %v458
    %v498 = vunpack.c.l.b16 %v459
    %v499 = vunpack.c.l.b16 %v460
    %v500 = vunpack.c.l.b16 %v461
    %v501 = vunpack.c.l.b16 %v462
    %v502 = vunpack.c.l.b16 %v463
    %v503 = vunpack.c.l.b16 %v464
    %v504 = vunpack.c.l.b16 %v465
    %v505 = vunpack.c.l.b16 %v466
    %v506 = vunpack.c.l.b16 %v467
    %v507 = vunpack.c.l.b16 %v468
    %v508 = vpack.c.b16 %v493, %v492
    %v509 = vpack.c.b16 %v495, %v494
    %v510 = vpack.c.b16 %v497, %v496
    %v511 = vpack.c.b16 %v499, %v498
    %v512 = vpack.c.b16 %v501, %v500
    %v513 = vpack.c.b16 %v503, %v502
    %v514 = vpack.c.b16 %v505, %v504
    %v515 = vpack.c.b16 %v507, %v506
    %524 = vmatprep.subr.bf16.mxu0 0
    %525 = vmatpush1.bf16.msra.mxu0 %v515
    %526 = vmatprep.subr.bf16.mxu0 0
    %527 = vmatpush1.bf16.msra.mxu0 %v514
    %528 = vmatprep.subr.bf16.mxu0 0
    %529 = vmatpush1.bf16.msra.mxu0 %v513
    %530 = vmatprep.subr.bf16.mxu0 0
    %531 = vmatpush1.bf16.msra.mxu0 %v512
    %532 = vmatprep.subr.bf16.mxu0 0
    %533 = vmatpush1.bf16.msra.mxu0 %v511
    %534 = vmatprep.subr.bf16.mxu0 0
    %535 = vmatpush1.bf16.msra.mxu0 %v510
    %536 = vmatprep.subr.bf16.mxu0 0
    %537 = vmatpush1.bf16.msra.mxu0 %v509
    %538 = vmatprep.subr.bf16.mxu0 0
    %539 = vmatpush1.bf16.msra.mxu0 %v508
    %540 = vmatprep.subr.bf16.mxu0 0
    %541 = vmatpush2.bf16.msra.mxu0 0
    %542 = vmatprep.subr.bf16.mxu0 0
    %543 = vmatpush2.bf16.msra.mxu0 0
    %544 = vmatprep.subr.bf16.mxu0 0
    %545 = vmatpush2.bf16.msra.mxu0 0
    %546 = vmatprep.subr.bf16.mxu0 0
    %547 = vmatpush2.bf16.msra.mxu0 0
    %548 = vmatprep.subr.bf16.mxu0 0
    %549 = vmatpush2.bf16.msra.mxu0 0
    %550 = vmatprep.subr.bf16.mxu0 0
    %551 = vmatpush2.bf16.msra.mxu0 0
    %552 = vmatprep.subr.bf16.mxu0 0
    %553 = vmatpush2.bf16.msra.mxu0 0
    %554 = vmatprep.subr.bf16.mxu0 0
    %555 = vmatpush2.bf16.msra.mxu0 0
    %556 = vmatprep.mubr.bf16.mxu0 0
    %557 = vmatmul.mubr.bf16.gmra.mxu0 %v452
    %v558 = vpop.f32.mrf.mxu0
    %v559 = vadd.f32 %v474, %v558
    %v560 = vpop.f32.mrf.mxu0
    %v561 = vpop.f32.mrf.mxu0
    %v562 = vadd.f32 %v474, %v561
    %v563 = vpop.f32.mrf.mxu0
    %564 = vdwg.mxu0
    %565 = vst [vmem:[#allocation11] sm:$0xff] %v559
    %566 = vst [vmem:[#allocation11 + $0x8] sm:$0xff] %v562
    // Predicated region
    $region58: #{tpu_custom_call.1} parent=1 // pred_check
      _
    $region59: #{tpu_custom_call.1} parent=1 // pred_check_branch
      %568 = sbr.rel (0) target = $region61
    $region60: #{tpu_custom_call.1} parent=1 // pred_region
      %s570 = ssub.s32 256, 256
      %571 = vsyncadd [#allocation4], %s570
      %s572 = sshll.u32 [#allocation11], 4
      %s573 = int_to_ptr.vmem [resolvable:$true] %s572
      %578 = dma.vmem_to_hbm [thread:$0]  %s573, 256, %s9, [#allocation4], 128, 128, 8
    $region61: #{tpu_custom_call.1} parent=1 // pred_fallthru
      _
    // Predicated region
    $region62: #{tpu_custom_call.1} parent=1 // pred_check
      _
    $region63: #{tpu_custom_call.1} parent=1 // pred_check_branch
      %580 = sbr.rel (0) target = $region65
    $region64: #{tpu_custom_call.1} parent=1 // pred_region
      %581 = dma.done [#allocation4], 256
    $region65: #{tpu_custom_call.1} parent=1 // pred_fallthru
      _
    %582 = vsyncpa [#allocation3], 1
    %583 = vsyncpa [#allocation6], 1
    %584 = vsyncpa [#allocation9], 1
    %585 = vsyncpa [#allocation4], 1

</llo_original>
